<compile_context>
chip_gen: v6e
topology: v6e:2x2x1
jax: 0.10.0
libtpu: 0.0.40
codegen_flags: <defaults>
</compile_context>

<pallas_src>
import functools

import numpy as np
import jax
import jax.numpy as jnp
from jax.experimental import pallas as pl
from jax.experimental.pallas import tpu as pltpu

_LANE = 128


# ----------------------------------------------------------------------------
# Pallas kernel:  acc[b, i, j] += sum_p x[p, j] * [tgt[b, p] == i]
# (normalization by 1/P and the (1 - bipart + softplus-mean) bias are applied
#  to the tiny (bs, C, U) result in the wrapper.)
# ----------------------------------------------------------------------------
def _cost_dot_kernel(tgt_ref, x_ref, out_ref, acc_ref, *, n_classes):
    p = pl.program_id(1)

    @pl.when(p == 0)
    def _():
        acc_ref[...] = jnp.zeros_like(acc_ref)

    x = x_ref[...]                                    # (TP, U): K on sublanes, U on lanes (canonical MXU RHS)
    tgt = tgt_ref[...]                                # (bs, TP) int32
    bs, tp = tgt.shape
    cls = jax.lax.broadcasted_iota(jnp.int32, (n_classes, tp), 0)
    for b in range(bs):                               # static unroll; bs small — x loaded once, reused for all b
        z = (tgt[b:b + 1, :] == cls).astype(x.dtype)  # (C, TP) one-hot (exact in bf16)
        # (C, TP) @ (TP, U) -> (C, U) on the MXU, f32 accumulation, no RHS transpose.
        acc_ref[b] += jax.lax.dot_general(
            z, x, (((1,), (0,)), ((), ())), preferred_element_type=jnp.float32)

    @pl.when(p == pl.num_programs(1) - 1)
    def _():
        out_ref[...] = acc_ref[...]


def _plan_point_tiling(n_points, bs, n_classes, uni_classes, x_itemsize,
                       num_splits, tp_cap, vmem_soft_budget=28 << 20):
    """Pick point tile TP (multiple of 128), reduction steps per split and the
    padded point count, keeping the per-step working set under a VMEM budget."""
    per_split = -(-n_points // num_splits)
    tp = max(_LANE, min(tp_cap, per_split))
    tp = ((tp + _LANE - 1) // _LANE) * _LANE

    def est(tp_):
        return (2 * tp_ * uni_classes * x_itemsize        # double-buffered x block
                + 2 * bs * tp_ * 4                        # double-buffered int32 target block
                + n_classes * tp_ * (x_itemsize + 8)      # one-hot + int32 compare temporaries
                + 3 * bs * n_classes * uni_classes * 4)   # accumulator + double-buffered out block

    while tp > _LANE and est(tp) > vmem_soft_budget:
        tp -= _LANE
    steps = -(-n_points // (num_splits * tp))
    p_pad = num_splits * steps * tp
    vmem_limit = int(min(56 << 20, max(32 << 20, 2 * est(tp))))
    return tp, steps, p_pad, vmem_limit


def cost_dot_pallas(tgt_idx, x_pu, n_classes, *, num_splits=2, tp_cap=6272):
    """tgt_idx: (bs, P) int32, x_pu: (P, U) -> (bs, C, U) f32 with
    out[b, i, j] = sum_p x_pu[p, j] * [tgt_idx[b, p] == i]."""
    bs, n_points = tgt_idx.shape
    uni = x_pu.shape[1]
    tp, steps, p_pad, vmem_limit = _plan_point_tiling(
        n_points, bs, n_classes, uni, x_pu.dtype.itemsize, num_splits, tp_cap)

    if p_pad != n_points:
        # Pad targets with n_classes (matches no real class -> zero one-hot) and x
        # with zeros, so padded points contribute nothing; 1/P uses the true P.
        tgt_idx = jnp.pad(tgt_idx, ((0, 0), (0, p_pad - n_points)),
                          constant_values=n_classes)
        x_pu = jnp.pad(x_pu, ((0, p_pad - n_points), (0, 0)))

    kernel = functools.partial(_cost_dot_kernel, n_classes=n_classes)
    partial_sums = pl.pallas_call(
        kernel,
        out_shape=jax.ShapeDtypeStruct((num_splits, bs, n_classes, uni), jnp.float32),
        grid=(num_splits, steps),
        in_specs=[
            pl.BlockSpec((bs, tp), lambda c, p: (0, c * steps + p)),    # int32 targets (no one-hot in HBM)
            pl.BlockSpec((tp, uni), lambda c, p: (c * steps + p, 0)),   # x streamed from HBM exactly once
        ],
        out_specs=pl.BlockSpec((None, bs, n_classes, uni), lambda c, p: (c, 0, 0, 0)),
        scratch_shapes=[pltpu.VMEM((bs, n_classes, uni), jnp.float32)],
        compiler_params=pltpu.CompilerParams(
            dimension_semantics=("parallel", "arbitrary"),              # split axis feeds both v7x TCs
            vmem_limit_bytes=vmem_limit),
    )(tgt_idx, x_pu)
    return jnp.sum(partial_sums, axis=0)                                # (bs, C, U)


# ----------------------------------------------------------------------------
# point_sample glue (plain JAX, fused in the same jit): grid_sample on random
# points in [0, 1].  With coords in [0, 1] the only out-of-range bilinear
# neighbours reflect/clamp back onto the border index, so clamp matches
# padding_mode='reflection' here (align_corners=False).
# ----------------------------------------------------------------------------
def _point_sample_nearest(img2d, coords):
    # img2d: (bs, H, W) float ; coords: (P, 2) in [0,1], (x, y) order
    _, H, W = img2d.shape
    x = coords[:, 0] * W - 0.5
    y = coords[:, 1] * H - 0.5
    xi = jnp.clip(jnp.round(x).astype(jnp.int32), 0, W - 1)
    yi = jnp.clip(jnp.round(y).astype(jnp.int32), 0, H - 1)
    return img2d[:, yi, xi]                          # (bs, P)


def _point_sample_bilinear(img, coords):
    # img: (bs, C, H, W) ; coords: (P, 2) in [0,1], (x, y) order; align_corners=False
    _, _, H, W = img.shape
    x = coords[:, 0] * W - 0.5
    y = coords[:, 1] * H - 0.5
    x0 = jnp.floor(x)
    y0 = jnp.floor(y)
    wx = (x - x0)[None, None, :]
    wy = (y - y0)[None, None, :]
    x0i = jnp.clip(x0.astype(jnp.int32), 0, W - 1)
    x1i = jnp.clip(x0.astype(jnp.int32) + 1, 0, W - 1)
    y0i = jnp.clip(y0.astype(jnp.int32), 0, H - 1)
    y1i = jnp.clip(y0.astype(jnp.int32) + 1, 0, H - 1)
    v00 = img[:, :, y0i, x0i]
    v01 = img[:, :, y0i, x1i]
    v10 = img[:, :, y1i, x0i]
    v11 = img[:, :, y1i, x1i]
    return (v00 * (1 - wx) * (1 - wy) + v01 * wx * (1 - wy)
            + v10 * (1 - wx) * wy + v11 * wx * wy)   # (bs, C, P)


# ----------------------------------------------------------------------------
# Fused device pipeline: sampling + softmax + Pallas cost kernel + present
# flags + on-device top-5.  Nothing big ever round-trips to the host.
# ----------------------------------------------------------------------------
@functools.partial(jax.jit, static_argnames=("n_classes", "n_points", "cost_dtype",
                                             "num_splits", "tp_cap"))
def _mcmf_device(unify_logits, target, bipart, key, *, n_classes, n_points,
                 cost_dtype, num_splits, tp_cap):
    bs = unify_logits.shape[0]
    uni = unify_logits.shape[1]
    dtype = unify_logits.dtype

    point_coords = jax.random.uniform(key, (n_points, 2), dtype=dtype)
    # Note: ignore_lb pixels (e.g. 255) match no class -> zero one-hot, but still
    # count in the 1/P normalization and softplus mean — exactly like the reference.
    tgt_mask = _point_sample_nearest(target.astype(dtype), point_coords)        # (bs, P)
    # Only batch-0 probs are ever paired in the reference (losses[:, j, :] with
    # j < uni_classes pairs (batch 0, uni class j) against target batch j % bs).
    out_mask0 = _point_sample_bilinear(unify_logits[0:1], point_coords)[0]      # (U, P)
    x0 = jax.nn.softmax(out_mask0.astype(jnp.float32), axis=0)                  # (U, P) probs

    # Batch/class-invariant BCE activation term (x >= 0 -> softplus(x)), computed
    # once over the TRUE point count and folded into one (C, U) bias.
    a_row = jnp.mean(jax.nn.softplus(x0), axis=-1)                              # (U,)
    bias = (1.0 - bipart.astype(jnp.float32)) + a_row[None, :]                  # (C, U)

    tgt_idx = tgt_mask.astype(jnp.int32)                                        # (bs, P)
    x_pu = x0.T.astype(cost_dtype)                                              # (P, U): lane-dim = U
    dot_sums = cost_dot_pallas(tgt_idx, x_pu, n_classes,
                               num_splits=num_splits, tp_cap=tp_cap)            # (bs, C, U)
    cost_all = bias[None] - dot_sums * (1.0 / n_points)                         # (bs, C, U)

    present = jnp.any(
        tgt_idx[:, :, None] == jnp.arange(n_classes)[None, None, :], axis=(0, 1))

    j_idx = jnp.arange(uni)
    cost_cu = cost_all[j_idx % bs, :, j_idx].T                                  # (C, U): column j uses batch j % bs
    # Top-5 smallest costs per class (ascending, like torch.topk(largest=False)).
    neg_vals, top_idx = jax.lax.top_k(-cost_cu, 5)                              # (C, 5)
    return present, top_idx, -neg_vals, cost_all


# ----------------------------------------------------------------------------
# Host-side graph machinery (exact port of the reference).
# ----------------------------------------------------------------------------
class Edge:
    def __init__(self, to, next, flow, dis, from_):
        self.to = to
        self.next = next
        self.flow = flow
        self.dis = dis
        self.from_ = from_


class MinCostMaxFlowPallas:
    def __init__(self, n_classes, uni_classes, n_points=12544, ignore_lb=255,
                 cost_dtype=jnp.bfloat16, num_core_splits=2, point_tile_cap=6272):
        assert uni_classes >= 5, "top-5 selection requires at least 5 uni classes"
        self.uni_classes = uni_classes
        self.n_classes = n_classes
        self.num_points = n_points
        self.ignore_lb = ignore_lb
        self.cost_dtype = cost_dtype                  # jnp.float32 for bit-faithful costs
        self.num_core_splits = num_core_splits
        self.point_tile_cap = point_tile_cap
        n = n_classes + uni_classes + 2
        m = n_classes + uni_classes + 5 * n_classes
        self.init_by_nmst(n, m, 0, n - 1)
        self.link_num = 0
        self._cost_all_dev = None

    def init_by_nmst(self, n, m, s, t):
        self.vis = np.zeros(n, dtype=bool)
        self.dis = np.full(n, np.inf)
        self.pre = np.zeros(n, dtype=int)
        self.last = np.zeros(2 * m, dtype=int)
        self.flow = np.full(n, np.inf)
        self.head = np.full(n, -1, dtype=int)
        self.num_edge = 0
        self.maxflow = 0
        self.mincost = 0
        self.q = []
        self.edge = [None] * (2 * m)
        self.n = n
        self.m = m
        self.s = s
        self.t = t

    def add_edge(self, from_, to, flow, dis):
        self.edge[self.num_edge] = Edge(to, self.head[from_], flow, dis, from_)
        self.head[from_] = self.num_edge
        self.num_edge += 1

    def spfa(self, s, t):
        self.dis.fill(np.inf)
        self.flow.fill(np.inf)
        self.vis.fill(False)
        self.q.append(s)
        self.vis[s] = True
        self.dis[s] = 0
        self.pre[t] = -1
        while self.q:
            now = self.q.pop(0)
            self.vis[now] = False
            i = self.head[now]
            while i != -1:
                e = self.edge[i]
                if e.flow > 0 and self.dis[e.to] > self.dis[now] + e.dis:
                    self.dis[e.to] = self.dis[now] + e.dis
                    self.pre[e.to] = now
                    self.last[e.to] = i
                    self.flow[e.to] = min(self.flow[now], e.flow)
                    if not self.vis[e.to]:
                        self.vis[e.to] = True
                        self.q.append(e.to)
                i = e.next
        return self.pre[t] != -1

    # ------------------------------------------------------------------
    def construct_edges(self, unify_logits, target, bipart, key):
        present_d, top_idx_d, top_val_d, cost_all_d = _mcmf_device(
            unify_logits, target, bipart, key,
            n_classes=self.n_classes, n_points=self.num_points,
            cost_dtype=self.cost_dtype, num_splits=self.num_core_splits,
            tp_cap=self.point_tile_cap)
        self._cost_all_dev = cost_all_d
        # Single small device->host fetch: (C,), (C, 5), (C, 5).
        present, top_idx, top_val = jax.device_get((present_d, top_idx_d, top_val_d))

        self.link_num = 0
        for i in range(self.n_classes):
            if not bool(present[i]):
                continue
            self.link_num += 5
            for idx, v in zip(top_idx[i], top_val[i]):
                self.add_edge(1 + int(idx), 1 + self.uni_classes + i, 1, float(v))
                self.add_edge(1 + self.uni_classes + i, 1 + int(idx), 0, -float(v))
        for j in range(self.uni_classes):
            self.add_edge(0, 1 + j, 1, 0)
            self.add_edge(1 + j, 0, 0, 0)
        for i in range(self.n_classes):
            self.add_edge(1 + self.uni_classes + i, self.n - 1, 2, 0)
            self.add_edge(self.n - 1, 1 + self.uni_classes + i, 0, 0)

    # ------------------------------------------------------------------
    def forward(self, unify_logits, target, bipart, key):
        self.construct_edges(unify_logits, target, bipart, key)
        # TODO(synk): SPFA min-cost max-flow is sequential, data-dependent pointer
        # chasing with no clean Pallas equivalent; it runs on host exactly as in
        # the reference.
        while self.spfa(self.s, self.t):
            now = self.t
            self.maxflow += self.flow[self.t]
            self.mincost += self.flow[self.t] * self.dis[self.t]
            while now != self.s:
                self.edge[self.last[now]].flow -= self.flow[self.t]
                self.edge[self.last[now] ^ 1].flow += self.flow[self.t]
                now = self.pre[now]
        ret = 255.0 * np.ones(self.uni_classes, dtype=np.float32)
        for i in range(0, 2 * self.link_num, 2):
            if self.edge[i].flow == 0:
                ret[self.edge[i].from_ - 1] = self.edge[i].to - 1 - self.uni_classes
        return jnp.asarray(ret)


# ----------------------------------------------------------------------------
if __name__ == "__main__":
    key = jax.random.PRNGKey(0)
    k_logits, k_target, k_bipart, k_points = jax.random.split(key, 4)

    bs, n_classes, uni_classes = 2, 6, 8
    H = W = 16
    n_points = 2560

    unify_logits = jax.random.normal(k_logits, (bs, uni_classes, H, W), dtype=jnp.float32)
    target = jax.random.randint(k_target, (bs, H, W), 0, n_classes, dtype=jnp.int32)
    bipart = jax.random.uniform(k_bipart, (n_classes, uni_classes), dtype=jnp.float32)

    # point_tile_cap=512 forces multiple reduction steps plus point padding at this
    # small size (exercising accumulate-over-P and the pad path); production sizes
    # run one full-tile step per core split.
    mcmf = MinCostMaxFlowPallas(n_classes, uni_classes, n_points=n_points,
                                point_tile_cap=512)
    ret = mcmf.forward(unify_logits, target, bipart, k_points)
    jax.block_until_ready(ret)
    jax.block_until_ready(mcmf._cost_all_dev)

    # Pure-XLA f32 reference for the cost matrices (loose tol covers the bf16 MXU feed).
    pc = jax.random.uniform(k_points, (n_points, 2), dtype=unify_logits.dtype)
    tgt_r = _point_sample_nearest(target.astype(unify_logits.dtype), pc).astype(jnp.int32)
    x_r = jax.nn.softmax(
        _point_sample_bilinear(unify_logits[0:1], pc)[0].astype(jnp.float32), axis=0)
    onehot = (tgt_r[:, None, :] == jnp.arange(n_classes)[None, :, None]).astype(jnp.float32)
    dot_r = jnp.einsum("bcp,up->bcu", onehot, x_r)
    a_r = jnp.mean(jax.nn.softplus(x_r), axis=-1)
    cost_r = (1.0 - bipart)[None] + a_r[None, None, :] - dot_r / n_points
    err = float(jnp.max(jnp.abs(cost_r - mcmf._cost_all_dev)))
    assert err < 3e-2, f"cost matrix mismatch: max abs err {err}"

    assert ret.shape == (uni_classes,)
    print("KERNEL_OK")
</pallas_src>

<mosaic_0001>
module attributes {stable_mosaic.version = 11 : i64} {
  func.func @_cost_dot_kernel(%arg0: i32, %arg1: i32, %arg2: memref<2x512xi32, #tpu.memory_space<vmem>>, %arg3: memref<512x8xbf16, #tpu.memory_space<vmem>>, %arg4: memref<1x2x6x8xf32, #tpu.memory_space<vmem>>, %arg5: memref<2x6x8xf32, #tpu.memory_space<vmem>>) attributes {dimension_semantics = [#tpu.dimension_semantics<parallel>, #tpu.dimension_semantics<arbitrary>], iteration_bounds = array<i64: 2, 3>, scalar_prefetch = 0 : i64, scratch_operands = 1 : i64, tpu.core_type = #tpu.core_type<tc>, window_params = [{transform_indices = @transform_0, window_bounds = array<i64: 2, 512>}, {transform_indices = @transform_1, window_bounds = array<i64: 512, 8>}, {transform_indices = @transform_2, window_bounds = array<i64: 1, 2, 6, 8>}]} {
    %c0_i32 = arith.constant 0 : i32
    %0 = arith.cmpi eq, %arg1, %c0_i32 : i32
    %1 = arith.extui %0 : i1 to i32
    %c0_i32_0 = arith.constant 0 : i32
    %2 = arith.cmpi ne, %1, %c0_i32_0 : i32
    scf.if %2 {
      %cst_17 = arith.constant 0.000000e+00 : f32
      %35 = vector.broadcast %cst_17 : f32 to vector<2x6x8xf32>
      %c0_18 = arith.constant 0 : index
      %c0_19 = arith.constant 0 : index
      %c0_20 = arith.constant 0 : index
      %36 = vector.load %arg5[%c0_18, %c0_19, %c0_20] : memref<2x6x8xf32, #tpu.memory_space<vmem>>, vector<2x6x8xf32>
      tpu.vector_store %arg5[%c0_18, %c0_19, %c0_20], %35 {strides = array<i32>} : memref<2x6x8xf32, #tpu.memory_space<vmem>>, vector<2x6x8xf32>,
    } else {
    }
    %c0 = arith.constant 0 : index
    %c0_1 = arith.constant 0 : index
    %3 = vector.load %arg3[%c0, %c0_1] : memref<512x8xbf16, #tpu.memory_space<vmem>>, vector<512x8xbf16>
    %c0_2 = arith.constant 0 : index
    %c0_3 = arith.constant 0 : index
    %4 = vector.load %arg2[%c0_2, %c0_3] : memref<2x512xi32, #tpu.memory_space<vmem>>, vector<2x512xi32>
    %5 = tpu.iota {dimensions = array<i32: 0>} : vector<6x512xi32>
    %6 = vector.extract_strided_slice %4 {offsets = [0, 0], sizes = [1, 512], strides = [1, 1]} : vector<2x512xi32> to vector<1x512xi32>
    %7 = vector.broadcast %6 : vector<1x512xi32> to vector<6x512xi32>
    %8 = arith.cmpi eq, %7, %5 : vector<6x512xi32>
    %9 = arith.extui %8 : vector<6x512xi1> to vector<6x512xi32>
    %10 = arith.sitofp %9 : vector<6x512xi32> to vector<6x512xf32>
    %11 = arith.truncf %10 : vector<6x512xf32> to vector<6x512xbf16>
    %c0_4 = arith.constant 0 : index
    %c0_5 = arith.constant 0 : index
    %c0_6 = arith.constant 0 : index
    %12 = vector.load %arg5[%c0_4, %c0_5, %c0_6] : memref<2x6x8xf32, #tpu.memory_space<vmem>>, vector<1x6x8xf32>
    %13 = vector.shape_cast %12 : vector<1x6x8xf32> to vector<6x8xf32>
    %cst = arith.constant dense<0.000000e+00> : vector<6x8xf32>
    %14 = tpu.matmul %11, %3, %cst {dimension_numbers = #tpu.dot_dimension_numbers<[1], [0], [0], [1], [0, 0, 1, 1], [], []>} : vector<6x512xbf16>, vector<512x8xbf16>, vector<6x8xf32> -> vector<6x8xf32>
    %15 = arith.addf %13, %14 : vector<6x8xf32>
    %c0_7 = arith.constant 0 : index
    %c0_8 = arith.constant 0 : index
    %c0_9 = arith.constant 0 : index
    %16 = vector.load %arg5[%c0_7, %c0_8, %c0_9] : memref<2x6x8xf32, #tpu.memory_space<vmem>>, vector<1x6x8xf32>
    %17 = vector.shape_cast %16 : vector<1x6x8xf32> to vector<6x8xf32>
    %18 = vector.shape_cast %15 : vector<6x8xf32> to vector<1x6x8xf32>
    tpu.vector_store %arg5[%c0_7, %c0_8, %c0_9], %18 {strides = array<i32>} : memref<2x6x8xf32, #tpu.memory_space<vmem>>, vector<1x6x8xf32>,
    %19 = vector.extract_strided_slice %4 {offsets = [1, 0], sizes = [1, 512], strides = [1, 1]} : vector<2x512xi32> to vector<1x512xi32>
    %20 = vector.broadcast %19 : vector<1x512xi32> to vector<6x512xi32>
    %21 = arith.cmpi eq, %20, %5 : vector<6x512xi32>
    %22 = arith.extui %21 : vector<6x512xi1> to vector<6x512xi32>
    %23 = arith.sitofp %22 : vector<6x512xi32> to vector<6x512xf32>
    %24 = arith.truncf %23 : vector<6x512xf32> to vector<6x512xbf16>
    %c1 = arith.constant 1 : index
    %c0_10 = arith.constant 0 : index
    %c0_11 = arith.constant 0 : index
    %25 = vector.load %arg5[%c1, %c0_10, %c0_11] : memref<2x6x8xf32, #tpu.memory_space<vmem>>, vector<1x6x8xf32>
    %26 = vector.shape_cast %25 : vector<1x6x8xf32> to vector<6x8xf32>
    %cst_12 = arith.constant dense<0.000000e+00> : vector<6x8xf32>
    %27 = tpu.matmul %24, %3, %cst_12 {dimension_numbers = #tpu.dot_dimension_numbers<[1], [0], [0], [1], [0, 0, 1, 1], [], []>} : vector<6x512xbf16>, vector<512x8xbf16>, vector<6x8xf32> -> vector<6x8xf32>
    %28 = arith.addf %26, %27 : vector<6x8xf32>
    %c1_13 = arith.constant 1 : index
    %c0_14 = arith.constant 0 : index
    %c0_15 = arith.constant 0 : index
    %29 = vector.load %arg5[%c1_13, %c0_14, %c0_15] : memref<2x6x8xf32, #tpu.memory_space<vmem>>, vector<1x6x8xf32>
    %30 = vector.shape_cast %29 : vector<1x6x8xf32> to vector<6x8xf32>
    %31 = vector.shape_cast %28 : vector<6x8xf32> to vector<1x6x8xf32>
    tpu.vector_store %arg5[%c1_13, %c0_14, %c0_15], %31 {strides = array<i32>} : memref<2x6x8xf32, #tpu.memory_space<vmem>>, vector<1x6x8xf32>,
    %c2_i32 = arith.constant 2 : i32
    %32 = arith.cmpi eq, %arg1, %c2_i32 : i32
    %33 = arith.extui %32 : i1 to i32
    %c0_i32_16 = arith.constant 0 : i32
    %34 = arith.cmpi ne, %33, %c0_i32_16 : i32
    scf.if %34 {
      %c0_17 = arith.constant 0 : index
      %c0_18 = arith.constant 0 : index
      %c0_19 = arith.constant 0 : index
      %35 = vector.load %arg5[%c0_17, %c0_18, %c0_19] : memref<2x6x8xf32, #tpu.memory_space<vmem>>, vector<2x6x8xf32>
      %c0_20 = arith.constant 0 : index
      %c0_21 = arith.constant 0 : index
      %c0_22 = arith.constant 0 : index
      %c0_23 = arith.constant 0 : index
      %36 = vector.load %arg4[%c0_20, %c0_21, %c0_22, %c0_23] : memref<1x2x6x8xf32, #tpu.memory_space<vmem>>, vector<1x2x6x8xf32>
      %37 = vector.shape_cast %36 : vector<1x2x6x8xf32> to vector<2x6x8xf32>
      %38 = vector.shape_cast %35 : vector<2x6x8xf32> to vector<1x2x6x8xf32>
      tpu.vector_store %arg4[%c0_20, %c0_21, %c0_22, %c0_23], %38 {strides = array<i32>} : memref<1x2x6x8xf32, #tpu.memory_space<vmem>>, vector<1x2x6x8xf32>,
    } else {
    }
    return
  }
  func.func @transform_0(%arg0: i32, %arg1: i32) -> (i32, i32) {
    %c3_i32 = arith.constant 3 : i32
    %0 = arith.muli %arg0, %c3_i32 : i32
    %1 = arith.addi %0, %arg1 : i32
    %c0_i32 = arith.constant 0 : i32
    %c0_i32_0 = arith.constant 0 : i32
    return %c0_i32, %1 : i32, i32
  }
  func.func @transform_1(%arg0: i32, %arg1: i32) -> (i32, i32) {
    %c3_i32 = arith.constant 3 : i32
    %0 = arith.muli %arg0, %c3_i32 : i32
    %1 = arith.addi %0, %arg1 : i32
    %c0_i32 = arith.constant 0 : i32
    %c0_i32_0 = arith.constant 0 : i32
    return %1, %c0_i32 : i32, i32
  }
  func.func @transform_2(%arg0: i32, %arg1: i32) -> (i32, i32, i32, i32) {
    %c0_i32 = arith.constant 0 : i32
    %c0_i32_0 = arith.constant 0 : i32
    %c0_i32_1 = arith.constant 0 : i32
    %c0_i32_2 = arith.constant 0 : i32
    return %arg0, %c0_i32, %c0_i32_0, %c0_i32_1 : i32, i32, i32, i32
  }
}

</mosaic_0001>

<llo_original>
// kernel: _mcmf_device.1
$region0: #{_mcmf_device.1}
  #allocation0 [shape = 'u32[]', space=smem, size = 0x4, offset = 0x4, fixed_abs, tag = 'smem constant byte address 0x4 - core index']
  #allocation1 [shape = 'u32[144,128]{1,0:T(1,128)}', space=vmem, size = 0x12000, scoped, tag = 'internal scratch']
  #allocation2 [shape = 'f32[2,6,8]{2,1,0:T(8,128)}', space=vmem, size = 0x2000, scoped, tag = 'scratch operand']
  %s0 = inlined_call_operand.vmem [shape: s32[2,3072], index: 0, kind: input, shape index: {}]
  %s1 = inlined_call_operand.vmem [shape: bf16[3072,8], index: 1, kind: input, shape index: {}]
  %s2 = inlined_call_operand.vmem [shape: f32[2,2,6,8], index: 2, kind: output, shape index: {}]
  %s3 = sld [smem:[#allocation0]]
  $region49: #{_mcmf_device.1} parent=0
    _
  %s5 = ssub.s32 1, %s3
  %s6 = scalar_select 0, %s5, %s3
  loop: start=0, step=1, limit=8
  $region2: #{_mcmf_device.1} parent=0 // loop_pre_header
    _
  $region3: #{_mcmf_device.1} parent=0 // loop_header
    %s8 = sphi 0, %s12
    %p9 = scmp.ge.s32.totalorder %s8, 8
    %s15 = sphi 0, %s27
    %s16 = sphi 0, %s23
    %s17 = sphi 0, %s15
    %s18 = sphi 0, %s16
    %s19 = sphi 0, %s17
    %s20 = sphi 0, %s18
    %s34 = sphi 0, %s36
    %s37 = sphi 0, %s34
    %s38 = sphi 0, %s37
    %s54 = sphi 0, %s38
    %s64 = sphi 0, %s66
    %s67 = sphi 0, %s64
    %s68 = sphi 0, %s67
    %s84 = sphi 0, %s68
    %s90 = sphi 0, %s92
    %s93 = sphi 0, %s90
    %s94 = sphi 0, %s93
    %s110 = sphi 0, %s94
  $region4: #{_mcmf_device.1} parent=0 // loop_header_branch
    %11 = sbr.rel (%p9) target = $region8
  $region5: #{_mcmf_device.1} parent=0 // loop_body
    %s13 = ssub.s32 %s8, 1
    %s14 = ssub.s32 %s8, 2
    %s21 = sadd.s32 1, %s16
    %p22 = scmp.ge.s32.totalorder %s21, 3
    %s23 = scalar_select %p22, 0, %s21
    %s24 = sadd.s32 1, %s15
    %s25 = scalar_select %p22, %s24, %s15
    %p26 = scmp.ge.s32.totalorder %s25, 2
    %s27 = scalar_select %p26, 0, %s25
    %s28 = smul.u32 %s15, 3
    %s29 = sadd.s32 %s28, %s16
    %s30 = smul.u32 %s27, 3
    %s31 = sadd.s32 %s30, %s23
    %s32 = ssub.s32 %s29, %s31
    %p33 = scmp.eq.s32.totalorder %s32, 0
    %s35 = sadd.s32 %s34, 1
    %s36 = scalar_select %p33, %s34, %s35
    %p39 = pneg %p33
    %p40 = scmp.eq.s32.totalorder %s8, 5
    %p41 = por %p39, %p40
    %p42 = scmp.ne.s32.totalorder %s34, %s37
    %p43 = scmp.eq.s32.totalorder %s8, 0
    %p44 = por %p42, %p43
    %p45 = scmp.ne.s32.totalorder %s34, %s37
    %p46 = scmp.eq.s32.totalorder %s13, 5
    %p47 = por %p45, %p46
    %p48 = scmp.ne.s32.totalorder %s37, %s38
    %p49 = scmp.eq.s32.totalorder %s13, 0
    %p50 = por %p48, %p49
    %p51 = scmp.ne.s32.totalorder %s37, %s38
    %p52 = scmp.eq.s32.totalorder %s14, 5
    %p53 = por %p51, %p52
    %p55 = scmp.ne.s32.totalorder %s38, %s54
    %p56 = scmp.eq.s32.totalorder %s14, 0
    %p57 = por %p55, %p56
    %s58 = smul.u32 %s15, 3
    %s59 = sadd.s32 %s58, %s16
    %s60 = smul.u32 %s27, 3
    %s61 = sadd.s32 %s60, %s23
    %s62 = ssub.s32 %s59, %s61
    %p63 = scmp.eq.s32.totalorder %s62, 0
    %s65 = sadd.s32 %s64, 1
    %s66 = scalar_select %p63, %s64, %s65
    %p69 = pneg %p63
    %p70 = scmp.eq.s32.totalorder %s8, 5
    %p71 = por %p69, %p70
    %p72 = scmp.ne.s32.totalorder %s64, %s67
    %p73 = scmp.eq.s32.totalorder %s8, 0
    %p74 = por %p72, %p73
    %p75 = scmp.ne.s32.totalorder %s64, %s67
    %p76 = scmp.eq.s32.totalorder %s13, 5
    %p77 = por %p75, %p76
    %p78 = scmp.ne.s32.totalorder %s67, %s68
    %p79 = scmp.eq.s32.totalorder %s13, 0
    %p80 = por %p78, %p79
    %p81 = scmp.ne.s32.totalorder %s67, %s68
    %p82 = scmp.eq.s32.totalorder %s14, 5
    %p83 = por %p81, %p82
    %p85 = scmp.ne.s32.totalorder %s68, %s84
    %p86 = scmp.eq.s32.totalorder %s14, 0
    %p87 = por %p85, %p86
    %s88 = ssub.s32 %s15, %s27
    %p89 = scmp.eq.s32.totalorder %s88, 0
    %s91 = sadd.s32 %s90, 1
    %s92 = scalar_select %p89, %s90, %s91
    %p95 = pneg %p89
    %p96 = scmp.eq.s32.totalorder %s8, 5
    %p97 = por %p95, %p96
    %p98 = scmp.ne.s32.totalorder %s90, %s93
    %p99 = scmp.eq.s32.totalorder %s8, 0
    %p100 = por %p98, %p99
    %p101 = scmp.ne.s32.totalorder %s90, %s93
    %p102 = scmp.eq.s32.totalorder %s13, 5
    %p103 = por %p101, %p102
    %p104 = scmp.ne.s32.totalorder %s93, %s94
    %p105 = scmp.eq.s32.totalorder %s13, 0
    %p106 = por %p104, %p105
    %p107 = scmp.ne.s32.totalorder %s93, %s94
    %p108 = scmp.eq.s32.totalorder %s14, 5
    %p109 = por %p107, %p108
    %p111 = scmp.ne.s32.totalorder %s94, %s110
    %p112 = scmp.eq.s32.totalorder %s14, 0
    %p113 = por %p111, %p112
    %p114 = scmp.le.s32.totalorder 1, %s8
    %p115 = scmp.lt.s32.totalorder %s8, 7
    %p116 = pnand %p114, %p115
    %p117 = pneg %p116
    // Predicated region
    $region9: #{_mcmf_device.1} parent=5 // pred_check
      _
    $region10: #{_mcmf_device.1} parent=5 // pred_check_branch
      %119 = sbr.rel (%p116) target = $region12
    $region11: #{_mcmf_device.1} parent=5 // pred_region
      %s120 = ssub.s32 %s8, 1
    $region12: #{_mcmf_device.1} parent=5 // pred_fallthru
      _
    %p121 = scmp.lt.s32.totalorder %s8, 6
    // Predicated region
    $region13: #{_mcmf_device.1} parent=5 // pred_check
      %p122 = pneg %p121
    $region14: #{_mcmf_device.1} parent=5 // pred_check_branch
      %124 = sbr.rel (%p122) target = $region16
    $region15: #{_mcmf_device.1} parent=5 // pred_region
      // Predicated region
      $region17: #{_mcmf_device.1} parent=15 // pred_check
        %p125 = pneg %p44
      $region18: #{_mcmf_device.1} parent=15 // pred_check_branch
        %127 = sbr.rel (%p125) target = $region20
      $region19: #{_mcmf_device.1} parent=15 // pred_region
        %s128 = smul.u32 %s15, 3
        %s129 = sadd.s32 %s128, %s16
        %s130 = smul.u32 4, %s129
        %p131 = scmp.lt.s32.totalorder %s130, 23
        %s132 = scalar_select %p131, %s130, 23
        %s133 = smul.addr %s132, 2
        %s134 = scalar_lea.vmem %s0, %s133
        %s135 = smul.u32 %s15, 3
        %s136 = sadd.s32 %s135, %s16
        %s137 = smul.u32 4, %s136
      $region20: #{_mcmf_device.1} parent=15 // pred_fallthru
        _
      // Predicated region
      $region21: #{_mcmf_device.1} parent=15 // pred_check
        %p138 = pneg %p74
      $region22: #{_mcmf_device.1} parent=15 // pred_check_branch
        %140 = sbr.rel (%p138) target = $region24
      $region23: #{_mcmf_device.1} parent=15 // pred_region
        %s141 = smul.u32 %s15, 3
        %s142 = sadd.s32 %s141, %s16
        %s143 = smul.u32 64, %s142
        %p144 = scmp.lt.s32.totalorder %s143, 383
        %s145 = scalar_select %p144, %s143, 383
        %s146 = smul.addr %s145, 4
        %s147 = scalar_lea.vmem %s1, %s146
        %s148 = smul.u32 %s15, 3
        %s149 = sadd.s32 %s148, %s16
        %s150 = smul.u32 64, %s149
      $region24: #{_mcmf_device.1} parent=15 // pred_fallthru
        _
    $region16: #{_mcmf_device.1} parent=5 // pred_fallthru
      _
    %p151 = scmp.le.s32.totalorder 1, %s8
    %p152 = scmp.lt.s32.totalorder %s8, 7
    %p153 = pnand %p151, %p152
    %p154 = pneg %p153
    // Predicated region
    $region25: #{_mcmf_device.1} parent=5 // pred_check
      _
    $region26: #{_mcmf_device.1} parent=5 // pred_check_branch
      %156 = sbr.rel (%p153) target = $region28
    $region27: #{_mcmf_device.1} parent=5 // pred_region
      %s157 = ssub.s32 %s8, 1
      %s158 = smul.u32 %s17, 3
      %s159 = sadd.s32 %s158, %s18
      %s160 = smul.u32 4, %s159
      %p161 = scmp.lt.s32.totalorder %s160, 23
      %s162 = scalar_select %p161, %s160, 23
      %s163 = smul.addr %s162, 2
      %s164 = scalar_lea.vmem %s0, %s163
      %p165 = pneg %p50
      %p166 = pneg %p47
      %s167 = smul.u32 %s17, 3
      %s168 = sadd.s32 %s167, %s18
      %s169 = smul.u32 64, %s168
      %p170 = scmp.lt.s32.totalorder %s169, 383
      %s171 = scalar_select %p170, %s169, 383
      %s172 = smul.addr %s171, 4
      %s173 = scalar_lea.vmem %s1, %s172
      %p174 = pneg %p80
      %p175 = pneg %p77
      %p176 = pneg %p106
      %p177 = pneg %p103
      %p178 = scmp.lt.s32.totalorder %s17, 1
      %s179 = scalar_select %p178, %s17, 1
      %s180 = smul.addr %s179, 2
      %s181 = smul.addr %s180, 8
      %s182 = scalar_lea.vmem %s2, %s181
      %s183 = smul.u32 %s17, 3
      %s184 = sadd.s32 %s183, %s18
      %s185 = smul.u32 4, %s184
      %p186 = scmp.lt.s32.totalorder %s185, 23
      %s187 = scalar_select %p186, %s185, 23
      %s188 = smul.addr %s187, 2
      %s189 = scalar_lea.vmem %s0, %s188
      %s190 = smul.u32 %s17, 3
      %s191 = sadd.s32 %s190, %s18
      %s192 = smul.u32 4, %s191
      %s193 = smul.u32 %s17, 3
      %s194 = sadd.s32 %s193, %s18
      %s195 = smul.u32 64, %s194
      %p196 = scmp.lt.s32.totalorder %s195, 383
      %s197 = scalar_select %p196, %s195, 383
      %s198 = smul.addr %s197, 4
      %s199 = scalar_lea.vmem %s1, %s198
      %s200 = smul.u32 %s17, 3
      %s201 = sadd.s32 %s200, %s18
      %s202 = smul.u32 64, %s201
      %p203 = scmp.lt.s32.totalorder %s17, 1
      %s204 = scalar_select %p203, %s17, 1
      %s205 = smul.addr %s204, 2
      %s206 = smul.addr %s205, 8
      %s207 = scalar_lea.vmem %s2, %s206
      %p209 = scmp.eq.s32.totalorder %s18, 0
      // Predicated region
      $region29: #{_mcmf_device.1} parent=27 // pred_check
        %p210 = pneg %p209
      $region30: #{_mcmf_device.1} parent=27 // pred_check_branch
        %212 = sbr.rel (%p210) target = $region32
      $region31: #{_mcmf_device.1} parent=27 // pred_region
        %vm213 = vcmask 62464
        %214 = vst.msk [vmem:[#allocation2] sm:$0x3f] %vm213, 0.0
        %215 = vst.msk [vmem:[#allocation2 + $0x8] sm:$0x3f] %vm213, 0.0
      $region32: #{_mcmf_device.1} parent=27 // pred_fallthru
        _
      %v216 = vld [vmem:[%s199] sm:$0xf]
      %v217 = vld [vmem:[%s199 + $0x4] sm:$0xf]
      %v218 = vld [vmem:[%s199 + $0x8] sm:$0xf]
      %v219 = vld [vmem:[%s199 + $0xc] sm:$0xf]
      %v220 = vld [vmem:[%s199 + $0x10] sm:$0xf]
      %v221 = vld [vmem:[%s199 + $0x14] sm:$0xf]
      %v222 = vld [vmem:[%s199 + $0x18] sm:$0xf]
      %v223 = vld [vmem:[%s199 + $0x1c] sm:$0xf]
      %v224 = vld [vmem:[%s199 + $0x20] sm:$0xf]
      %v225 = vld [vmem:[%s199 + $0x24] sm:$0xf]
      %v226 = vld [vmem:[%s199 + $0x28] sm:$0xf]
      %v227 = vld [vmem:[%s199 + $0x2c] sm:$0xf]
      %v228 = vld [vmem:[%s199 + $0x30] sm:$0xf]
      %v229 = vld [vmem:[%s199 + $0x34] sm:$0xf]
      %v230 = vld [vmem:[%s199 + $0x38] sm:$0xf]
      %v231 = vld [vmem:[%s199 + $0x3c] sm:$0xf]
      %v232 = vld [vmem:[%s199 + $0x40] sm:$0xf]
      %v233 = vld [vmem:[%s199 + $0x44] sm:$0xf]
      %v234 = vld [vmem:[%s199 + $0x48] sm:$0xf]
      %v235 = vld [vmem:[%s199 + $0x4c] sm:$0xf]
      %v236 = vld [vmem:[%s199 + $0x50] sm:$0xf]
      %v237 = vld [vmem:[%s199 + $0x54] sm:$0xf]
      %v238 = vld [vmem:[%s199 + $0x58] sm:$0xf]
      %v239 = vld [vmem:[%s199 + $0x5c] sm:$0xf]
      %v240 = vld [vmem:[%s199 + $0x60] sm:$0xf]
      %v241 = vld [vmem:[%s199 + $0x64] sm:$0xf]
      %v242 = vld [vmem:[%s199 + $0x68] sm:$0xf]
      %v243 = vld [vmem:[%s199 + $0x6c] sm:$0xf]
      %v244 = vld [vmem:[%s199 + $0x70] sm:$0xf]
      %v245 = vld [vmem:[%s199 + $0x74] sm:$0xf]
      %v246 = vld [vmem:[%s199 + $0x78] sm:$0xf]
      %v247 = vld [vmem:[%s199 + $0x7c] sm:$0xf]
      %v248 = vld [vmem:[%s199 + $0x80] sm:$0xf]
      %v249 = vld [vmem:[%s199 + $0x84] sm:$0xf]
      %v250 = vld [vmem:[%s199 + $0x88] sm:$0xf]
      %v251 = vld [vmem:[%s199 + $0x8c] sm:$0xf]
      %v252 = vld [vmem:[%s199 + $0x90] sm:$0xf]
      %v253 = vld [vmem:[%s199 + $0x94] sm:$0xf]
      %v254 = vld [vmem:[%s199 + $0x98] sm:$0xf]
      %v255 = vld [vmem:[%s199 + $0x9c] sm:$0xf]
      %v256 = vld [vmem:[%s199 + $0xa0] sm:$0xf]
      %v257 = vld [vmem:[%s199 + $0xa4] sm:$0xf]
      %v258 = vld [vmem:[%s199 + $0xa8] sm:$0xf]
      %v259 = vld [vmem:[%s199 + $0xac] sm:$0xf]
      %v260 = vld [vmem:[%s199 + $0xb0] sm:$0xf]
      %v261 = vld [vmem:[%s199 + $0xb4] sm:$0xf]
      %v262 = vld [vmem:[%s199 + $0xb8] sm:$0xf]
      %v263 = vld [vmem:[%s199 + $0xbc] sm:$0xf]
      %v264 = vld [vmem:[%s199 + $0xc0] sm:$0xf]
      %v265 = vld [vmem:[%s199 + $0xc4] sm:$0xf]
      %v266 = vld [vmem:[%s199 + $0xc8] sm:$0xf]
      %v267 = vld [vmem:[%s199 + $0xcc] sm:$0xf]
      %v268 = vld [vmem:[%s199 + $0xd0] sm:$0xf]
      %v269 = vld [vmem:[%s199 + $0xd4] sm:$0xf]
      %v270 = vld [vmem:[%s199 + $0xd8] sm:$0xf]
      %v271 = vld [vmem:[%s199 + $0xdc] sm:$0xf]
      %v272 = vld [vmem:[%s199 + $0xe0] sm:$0xf]
      %v273 = vld [vmem:[%s199 + $0xe4] sm:$0xf]
      %v274 = vld [vmem:[%s199 + $0xe8] sm:$0xf]
      %v275 = vld [vmem:[%s199 + $0xec] sm:$0xf]
      %v276 = vld [vmem:[%s199 + $0xf0] sm:$0xf]
      %v277 = vld [vmem:[%s199 + $0xf4] sm:$0xf]
      %v278 = vld [vmem:[%s199 + $0xf8] sm:$0xf]
      %v279 = vld [vmem:[%s199 + $0xfc] sm:$0xf]
      %v280 = vld [vmem:[%s189] sm:$0xff]
      %v281 = vlaneseq
      %v282 = vshrl.u32 %v281, 7
      %v283 = vlaneseq
      %v284 = vshrl.u32 %v283, 7
      %v285 = vsub.s32 0, %v284
      %v286 = vrot.slane %v280, %v285
      %v287 = vlaneseq
      %v288 = vshrl.u32 %v287, 7
      %v289 = vsub.s32 2, %v288
      %v290 = vrot.slane %v280, %v289
      %v291 = vlaneseq
      %v292 = vshrl.u32 %v291, 7
      %v293 = vsub.s32 4, %v292
      %v294 = vrot.slane %v280, %v293
      %v295 = vlaneseq
      %v296 = vshrl.u32 %v295, 7
      %v297 = vsub.s32 6, %v296
      %v298 = vrot.slane %v280, %v297
      %v299 = vlaneseq
      %v300 = vshrl.u32 %v299, 7
      %v301 = vsub.s32 0, %v300
      %v302 = vrot.slane %v286, %v301
      %v303 = vlaneseq
      %v304 = vshrl.u32 %v303, 7
      %v305 = vsub.s32 0, %v304
      %v306 = vrot.slane %v290, %v305
      %v307 = vlaneseq
      %v308 = vshrl.u32 %v307, 7
      %v309 = vsub.s32 0, %v308
      %v310 = vrot.slane %v294, %v309
      %v311 = vlaneseq
      %v312 = vshrl.u32 %v311, 7
      %v313 = vsub.s32 0, %v312
      %v314 = vrot.slane %v298, %v313
      %vm315 = vcmp.eq.s32.totalorder %v302, %v282
      %vm316 = vcmp.eq.s32.totalorder %v306, %v282
      %vm317 = vcmp.eq.s32.totalorder %v310, %v282
      %vm318 = vcmp.eq.s32.totalorder %v314, %v282
      %v319 = vsel %vm315, 1, 0
      %v320 = vsel %vm316, 1, 0
      %v321 = vsel %vm317, 1, 0
      %v322 = vsel %vm318, 1, 0
      %v323 = vcvt.s32.f32 %v319
      %v324 = vcvt.s32.f32 %v320
      %v325 = vcvt.s32.f32 %v321
      %v326 = vcvt.s32.f32 %v322
      %v327 = vpack.c.bf16 %v323, %v323
      %v328 = vpack.c.bf16 %v324, %v324
      %v329 = vpack.c.bf16 %v325, %v325
      %v330 = vpack.c.bf16 %v326, %v326
      %v331 = vld [vmem:[#allocation2] sm:$0x3f]
      %v396 = vunpack.c.l.b16 %v216
      %v397 = vunpack.c.l.b16 %v217
      %v398 = vunpack.c.l.b16 %v218
      %v399 = vunpack.c.l.b16 %v219
      %v400 = vunpack.c.l.b16 %v220
      %v401 = vunpack.c.l.b16 %v221
      %v402 = vunpack.c.l.b16 %v222
      %v403 = vunpack.c.l.b16 %v223
      %v404 = vunpack.c.l.b16 %v224
      %v405 = vunpack.c.l.b16 %v225
      %v406 = vunpack.c.l.b16 %v226
      %v407 = vunpack.c.l.b16 %v227
      %v408 = vunpack.c.l.b16 %v228
      %v409 = vunpack.c.l.b16 %v229
      %v410 = vunpack.c.l.b16 %v230
      %v411 = vunpack.c.l.b16 %v231
      %v412 = vunpack.c.l.b16 %v232
      %v413 = vunpack.c.l.b16 %v233
      %v414 = vunpack.c.l.b16 %v234
      %v415 = vunpack.c.l.b16 %v235
      %v416 = vunpack.c.l.b16 %v236
      %v417 = vunpack.c.l.b16 %v237
      %v418 = vunpack.c.l.b16 %v238
      %v419 = vunpack.c.l.b16 %v239
      %v420 = vunpack.c.l.b16 %v240
      %v421 = vunpack.c.l.b16 %v241
      %v422 = vunpack.c.l.b16 %v242
      %v423 = vunpack.c.l.b16 %v243
      %v424 = vunpack.c.l.b16 %v244
      %v425 = vunpack.c.l.b16 %v245
      %v426 = vunpack.c.l.b16 %v246
      %v427 = vunpack.c.l.b16 %v247
      %v428 = vunpack.c.l.b16 %v248
      %v429 = vunpack.c.l.b16 %v249
      %v430 = vunpack.c.l.b16 %v250
      %v431 = vunpack.c.l.b16 %v251
      %v432 = vunpack.c.l.b16 %v252
      %v433 = vunpack.c.l.b16 %v253
      %v434 = vunpack.c.l.b16 %v254
      %v435 = vunpack.c.l.b16 %v255
      %v436 = vunpack.c.l.b16 %v256
      %v437 = vunpack.c.l.b16 %v257
      %v438 = vunpack.c.l.b16 %v258
      %v439 = vunpack.c.l.b16 %v259
      %v440 = vunpack.c.l.b16 %v260
      %v441 = vunpack.c.l.b16 %v261
      %v442 = vunpack.c.l.b16 %v262
      %v443 = vunpack.c.l.b16 %v263
      %v444 = vunpack.c.l.b16 %v264
      %v445 = vunpack.c.l.b16 %v265
      %v446 = vunpack.c.l.b16 %v266
      %v447 = vunpack.c.l.b16 %v267
      %v448 = vunpack.c.l.b16 %v268
      %v449 = vunpack.c.l.b16 %v269
      %v450 = vunpack.c.l.b16 %v270
      %v451 = vunpack.c.l.b16 %v271
      %v452 = vunpack.c.l.b16 %v272
      %v453 = vunpack.c.l.b16 %v273
      %v454 = vunpack.c.l.b16 %v274
      %v455 = vunpack.c.l.b16 %v275
      %v456 = vunpack.c.l.b16 %v276
      %v457 = vunpack.c.l.b16 %v277
      %v458 = vunpack.c.l.b16 %v278
      %v459 = vunpack.c.l.b16 %v279
      %v460 = vpack.c.b16 %v397, %v396
      %v461 = vpack.c.b16 %v399, %v398
      %v462 = vpack.c.b16 %v401, %v400
      %v463 = vpack.c.b16 %v403, %v402
      %v464 = vpack.c.b16 %v405, %v404
      %v465 = vpack.c.b16 %v407, %v406
      %v466 = vpack.c.b16 %v409, %v408
      %v467 = vpack.c.b16 %v411, %v410
      %v468 = vpack.c.b16 %v413, %v412
      %v469 = vpack.c.b16 %v415, %v414
      %v470 = vpack.c.b16 %v417, %v416
      %v471 = vpack.c.b16 %v419, %v418
      %v472 = vpack.c.b16 %v421, %v420
      %v473 = vpack.c.b16 %v423, %v422
      %v474 = vpack.c.b16 %v425, %v424
      %v475 = vpack.c.b16 %v427, %v426
      %v476 = vpack.c.b16 %v429, %v428
      %v477 = vpack.c.b16 %v431, %v430
      %v478 = vpack.c.b16 %v433, %v432
      %v479 = vpack.c.b16 %v435, %v434
      %v480 = vpack.c.b16 %v437, %v436
      %v481 = vpack.c.b16 %v439, %v438
      %v482 = vpack.c.b16 %v441, %v440
      %v483 = vpack.c.b16 %v443, %v442
      %v484 = vpack.c.b16 %v445, %v444
      %v485 = vpack.c.b16 %v447, %v446
      %v486 = vpack.c.b16 %v449, %v448
      %v487 = vpack.c.b16 %v451, %v450
      %v488 = vpack.c.b16 %v453, %v452
      %v489 = vpack.c.b16 %v455, %v454
      %v490 = vpack.c.b16 %v457, %v456
      %v491 = vpack.c.b16 %v459, %v458
      %524 = vmatprep.subr.bf16.mxu0 0
      %525 = vmatpush1.bf16.msra.mxu0 %v467
      %526 = vmatprep.subr.bf16.mxu0 0
      %527 = vmatpush1.bf16.msra.mxu0 %v466
      %528 = vmatprep.subr.bf16.mxu0 0
      %529 = vmatpush1.bf16.msra.mxu0 %v465
      %530 = vmatprep.subr.bf16.mxu0 0
      %531 = vmatpush1.bf16.msra.mxu0 %v464
      %532 = vmatprep.subr.bf16.mxu0 0
      %533 = vmatpush1.bf16.msra.mxu0 %v463
      %534 = vmatprep.subr.bf16.mxu0 0
      %535 = vmatpush1.bf16.msra.mxu0 %v462
      %536 = vmatprep.subr.bf16.mxu0 0
      %537 = vmatpush1.bf16.msra.mxu0 %v461
      %538 = vmatprep.subr.bf16.mxu0 0
      %539 = vmatpush1.bf16.msra.mxu0 %v460
      %540 = vmatprep.subr.bf16.mxu0 0
      %541 = vmatpush2.bf16.msra.mxu0 %v475
      %542 = vmatprep.subr.bf16.mxu0 0
      %543 = vmatpush2.bf16.msra.mxu0 %v474
      %544 = vmatprep.subr.bf16.mxu0 0
      %545 = vmatpush2.bf16.msra.mxu0 %v473
      %546 = vmatprep.subr.bf16.mxu0 0
      %547 = vmatpush2.bf16.msra.mxu0 %v472
      %548 = vmatprep.subr.bf16.mxu0 0
      %549 = vmatpush2.bf16.msra.mxu0 %v471
      %550 = vmatprep.subr.bf16.mxu0 0
      %551 = vmatpush2.bf16.msra.mxu0 %v470
      %552 = vmatprep.subr.bf16.mxu0 0
      %553 = vmatpush2.bf16.msra.mxu0 %v469
      %554 = vmatprep.subr.bf16.mxu0 0
      %555 = vmatpush2.bf16.msra.mxu0 %v468
      %556 = vmatprep.mubr.bf16.mxu0 %v328
      %557 = vmatmul.mubr.bf16.gmra.mxu0 %v327
      %v558 = vpop.f32.mrf.mxu0
      %v559 = vadd.f32 0.0, %v558
      %v560 = vpop.f32.mrf.mxu0
      %v561 = vpop.f32.mrf.mxu0
      %v562 = vpop.f32.mrf.mxu0
      %563 = vdwg.mxu0
      %564 = vmatprep.subr.bf16.mxu0 0
      %565 = vmatpush1.bf16.msra.mxu0 %v483
      %566 = vmatprep.subr.bf16.mxu0 0
      %567 = vmatpush1.bf16.msra.mxu0 %v482
      %568 = vmatprep.subr.bf16.mxu0 0
      %569 = vmatpush1.bf16.msra.mxu0 %v481
      %570 = vmatprep.subr.bf16.mxu0 0
      %571 = vmatpush1.bf16.msra.mxu0 %v480
      %572 = vmatprep.subr.bf16.mxu0 0
      %573 = vmatpush1.bf16.msra.mxu0 %v479
      %574 = vmatprep.subr.bf16.mxu0 0
      %575 = vmatpush1.bf16.msra.mxu0 %v478
      %576 = vmatprep.subr.bf16.mxu0 0
      %577 = vmatpush1.bf16.msra.mxu0 %v477
      %578 = vmatprep.subr.bf16.mxu0 0
      %579 = vmatpush1.bf16.msra.mxu0 %v476
      %580 = vmatprep.subr.bf16.mxu0 0
      %581 = vmatpush2.bf16.msra.mxu0 %v491
      %582 = vmatprep.subr.bf16.mxu0 0
      %583 = vmatpush2.bf16.msra.mxu0 %v490
      %584 = vmatprep.subr.bf16.mxu0 0
      %585 = vmatpush2.bf16.msra.mxu0 %v489
      %586 = vmatprep.subr.bf16.mxu0 0
      %587 = vmatpush2.bf16.msra.mxu0 %v488
      %588 = vmatprep.subr.bf16.mxu0 0
      %589 = vmatpush2.bf16.msra.mxu0 %v487
      %590 = vmatprep.subr.bf16.mxu0 0
      %591 = vmatpush2.bf16.msra.mxu0 %v486
      %592 = vmatprep.subr.bf16.mxu0 0
      %593 = vmatpush2.bf16.msra.mxu0 %v485
      %594 = vmatprep.subr.bf16.mxu0 0
      %595 = vmatpush2.bf16.msra.mxu0 %v484
      %596 = vmatprep.mubr.bf16.mxu0 %v330
      %597 = vmatmul.mubr.bf16.gmra.mxu0 %v329
      %v598 = vpop.f32.mrf.mxu0
      %v599 = vadd.f32 %v559, %v598
      %v600 = vpop.f32.mrf.mxu0
      %v601 = vpop.f32.mrf.mxu0
      %v602 = vpop.f32.mrf.mxu0
      %603 = vdwg.mxu0
      %v604 = vadd.f32 %v331, %v599
      %vm605 = vcmask 62464
      %606 = vst.msk [vmem:[#allocation2] sm:$0x3f] %vm605, %v604
      %v607 = vlaneseq
      %v608 = vshrl.u32 %v607, 7
      %v609 = vsub.s32 1, %v608
      %v610 = vrot.slane %v280, %v609
      %v611 = vlaneseq
      %v612 = vshrl.u32 %v611, 7
      %v613 = vsub.s32 3, %v612
      %v614 = vrot.slane %v280, %v613
      %v615 = vlaneseq
      %v616 = vshrl.u32 %v615, 7
      %v617 = vsub.s32 5, %v616
      %v618 = vrot.slane %v280, %v617
      %v619 = vlaneseq
      %v620 = vshrl.u32 %v619, 7
      %v621 = vsub.s32 7, %v620
      %v622 = vrot.slane %v280, %v621
      %v623 = vlaneseq
      %v624 = vshrl.u32 %v623, 7
      %v625 = vsub.s32 1, %v624
      %v626 = vrot.slane %v610, %v625
      %v627 = vlaneseq
      %v628 = vshrl.u32 %v627, 7
      %v629 = vsub.s32 1, %v628
      %v630 = vrot.slane %v614, %v629
      %v631 = vlaneseq
      %v632 = vshrl.u32 %v631, 7
      %v633 = vsub.s32 1, %v632
      %v634 = vrot.slane %v618, %v633
      %v635 = vlaneseq
      %v636 = vshrl.u32 %v635, 7
      %v637 = vsub.s32 1, %v636
      %v638 = vrot.slane %v622, %v637
      %vm639 = vcmp.eq.s32.totalorder %v626, %v282
      %vm640 = vcmp.eq.s32.totalorder %v630, %v282
      %vm641 = vcmp.eq.s32.totalorder %v634, %v282
      %vm642 = vcmp.eq.s32.totalorder %v638, %v282
      %v643 = vsel %vm639, 1, 0
      %v644 = vsel %vm640, 1, 0
      %v645 = vsel %vm641, 1, 0
      %v646 = vsel %vm642, 1, 0
      %v647 = vcvt.s32.f32 %v643
      %v648 = vcvt.s32.f32 %v644
      %v649 = vcvt.s32.f32 %v645
      %v650 = vcvt.s32.f32 %v646
      %v651 = vpack.c.bf16 %v647, %v647
      %v652 = vpack.c.bf16 %v648, %v648
      %v653 = vpack.c.bf16 %v649, %v649
      %v654 = vpack.c.bf16 %v650, %v650
      %s655 = scalar_lea.vmem [#allocation2], 8
      %v656 = vld [vmem:[%s655] sm:$0x3f]
      %657 = vmatprep.subr.bf16.mxu0 0
      %658 = vmatpush1.bf16.msra.mxu0 %v467
      %659 = vmatprep.subr.bf16.mxu0 0
      %660 = vmatpush1.bf16.msra.mxu0 %v466
      %661 = vmatprep.subr.bf16.mxu0 0
      %662 = vmatpush1.bf16.msra.mxu0 %v465
      %663 = vmatprep.subr.bf16.mxu0 0
      %664 = vmatpush1.bf16.msra.mxu0 %v464
      %665 = vmatprep.subr.bf16.mxu0 0
      %666 = vmatpush1.bf16.msra.mxu0 %v463
      %667 = vmatprep.subr.bf16.mxu0 0
      %668 = vmatpush1.bf16.msra.mxu0 %v462
      %669 = vmatprep.subr.bf16.mxu0 0
      %670 = vmatpush1.bf16.msra.mxu0 %v461
      %671 = vmatprep.subr.bf16.mxu0 0
      %672 = vmatpush1.bf16.msra.mxu0 %v460
      %673 = vmatprep.subr.bf16.mxu0 0
      %674 = vmatpush2.bf16.msra.mxu0 %v475
      %675 = vmatprep.subr.bf16.mxu0 0
      %676 = vmatpush2.bf16.msra.mxu0 %v474
      %677 = vmatprep.subr.bf16.mxu0 0
      %678 = vmatpush2.bf16.msra.mxu0 %v473
      %679 = vmatprep.subr.bf16.mxu0 0
      %680 = vmatpush2.bf16.msra.mxu0 %v472
      %681 = vmatprep.subr.bf16.mxu0 0
      %682 = vmatpush2.bf16.msra.mxu0 %v471
      %683 = vmatprep.subr.bf16.mxu0 0
      %684 = vmatpush2.bf16.msra.mxu0 %v470
      %685 = vmatprep.subr.bf16.mxu0 0
      %686 = vmatpush2.bf16.msra.mxu0 %v469
      %687 = vmatprep.subr.bf16.mxu0 0
      %688 = vmatpush2.bf16.msra.mxu0 %v468
      %689 = vmatprep.mubr.bf16.mxu0 %v652
      %690 = vmatmul.mubr.bf16.gmra.mxu0 %v651
      %v691 = vpop.f32.mrf.mxu0
      %v692 = vadd.f32 0.0, %v691
      %v693 = vpop.f32.mrf.mxu0
      %v694 = vpop.f32.mrf.mxu0
      %v695 = vpop.f32.mrf.mxu0
      %696 = vdwg.mxu0
      %697 = vmatprep.subr.bf16.mxu0 0
      %698 = vmatpush1.bf16.msra.mxu0 %v483
      %699 = vmatprep.subr.bf16.mxu0 0
      %700 = vmatpush1.bf16.msra.mxu0 %v482
      %701 = vmatprep.subr.bf16.mxu0 0
      %702 = vmatpush1.bf16.msra.mxu0 %v481
      %703 = vmatprep.subr.bf16.mxu0 0
      %704 = vmatpush1.bf16.msra.mxu0 %v480
      %705 = vmatprep.subr.bf16.mxu0 0
      %706 = vmatpush1.bf16.msra.mxu0 %v479
      %707 = vmatprep.subr.bf16.mxu0 0
      %708 = vmatpush1.bf16.msra.mxu0 %v478
      %709 = vmatprep.subr.bf16.mxu0 0
      %710 = vmatpush1.bf16.msra.mxu0 %v477
      %711 = vmatprep.subr.bf16.mxu0 0
      %712 = vmatpush1.bf16.msra.mxu0 %v476
      %713 = vmatprep.subr.bf16.mxu0 0
      %714 = vmatpush2.bf16.msra.mxu0 %v491
      %715 = vmatprep.subr.bf16.mxu0 0
      %716 = vmatpush2.bf16.msra.mxu0 %v490
      %717 = vmatprep.subr.bf16.mxu0 0
      %718 = vmatpush2.bf16.msra.mxu0 %v489
      %719 = vmatprep.subr.bf16.mxu0 0
      %720 = vmatpush2.bf16.msra.mxu0 %v488
      %721 = vmatprep.subr.bf16.mxu0 0
      %722 = vmatpush2.bf16.msra.mxu0 %v487
      %723 = vmatprep.subr.bf16.mxu0 0
      %724 = vmatpush2.bf16.msra.mxu0 %v486
      %725 = vmatprep.subr.bf16.mxu0 0
      %726 = vmatpush2.bf16.msra.mxu0 %v485
      %727 = vmatprep.subr.bf16.mxu0 0
      %728 = vmatpush2.bf16.msra.mxu0 %v484
      %729 = vmatprep.mubr.bf16.mxu0 %v654
      %730 = vmatmul.mubr.bf16.gmra.mxu0 %v653
      %v731 = vpop.f32.mrf.mxu0
      %v732 = vadd.f32 %v692, %v731
      %v733 = vpop.f32.mrf.mxu0
      %v734 = vpop.f32.mrf.mxu0
      %v735 = vpop.f32.mrf.mxu0
      %736 = vdwg.mxu0
      %v737 = vadd.f32 %v656, %v732
      %738 = vst.msk [vmem:[%s655] sm:$0x3f] %vm605, %v737
      %p739 = scmp.eq.s32.totalorder %s18, 2
      // Predicated region
      $region33: #{_mcmf_device.1} parent=27 // pred_check
        %p740 = pneg %p739
      $region34: #{_mcmf_device.1} parent=27 // pred_check_branch
        %742 = sbr.rel (%p740) target = $region36
      $region35: #{_mcmf_device.1} parent=27 // pred_region
        %v743 = vld [vmem:[#allocation2] sm:$0x3f]
        %v744 = vld [vmem:[#allocation2 + $0x8] sm:$0x3f]
        %745 = vst.msk [vmem:[%s207] sm:$0x3f] %vm605, %v743
        %746 = vst.msk [vmem:[%s207 + $0x8] sm:$0x3f] %vm605, %v744
      $region36: #{_mcmf_device.1} parent=27 // pred_fallthru
        _
      %p747 = scmp.lt.s32.totalorder %s17, 1
      %s748 = scalar_select %p747, %s17, 1
      %s749 = smul.addr %s748, 2
      %s750 = smul.addr %s749, 8
      %s751 = scalar_lea.vmem %s2, %s750
      // Predicated region
      $region37: #{_mcmf_device.1} parent=27 // pred_check
        %p752 = pneg %p103
      $region38: #{_mcmf_device.1} parent=27 // pred_check_branch
        %754 = sbr.rel (%p752) target = $region40
      $region39: #{_mcmf_device.1} parent=27 // pred_region
        _
      $region40: #{_mcmf_device.1} parent=27 // pred_fallthru
        _
    $region28: #{_mcmf_device.1} parent=5 // pred_fallthru
      _
    %p755 = scmp.le.s32.totalorder 2, %s8
    // Predicated region
    $region41: #{_mcmf_device.1} parent=5 // pred_check
      %p756 = pneg %p755
    $region42: #{_mcmf_device.1} parent=5 // pred_check_branch
      %758 = sbr.rel (%p756) target = $region44
    $region43: #{_mcmf_device.1} parent=5 // pred_region
      %s759 = ssub.s32 %s8, 2
      // Predicated region
      $region45: #{_mcmf_device.1} parent=43 // pred_check
        %p760 = pneg %p109
      $region46: #{_mcmf_device.1} parent=43 // pred_check_branch
        %762 = sbr.rel (%p760) target = $region48
      $region47: #{_mcmf_device.1} parent=43 // pred_region
        %p763 = scmp.lt.s32.totalorder %s19, 1
        %s764 = scalar_select %p763, %s19, 1
        %s765 = smul.addr %s764, 2
        %s766 = smul.addr %s765, 8
        %s767 = scalar_lea.vmem %s2, %s766
      $region48: #{_mcmf_device.1} parent=43 // pred_fallthru
        _
    $region44: #{_mcmf_device.1} parent=5 // pred_fallthru
      _
  $region6: #{_mcmf_device.1} parent=0 // loop_footer
    %s12 = sadd.s32 1, %s8
  $region7: #{_mcmf_device.1} parent=0 // loop_footer_branch
    %7 = sbr.rel target = $region3
  $region8: #{_mcmf_device.1} parent=0 // loop_exit
    _

</llo_original>
